<compile_context>
chip_gen: v5e
topology: v5e:2x2
jax: 0.10.0
libtpu: 0.0.40
codegen_flags: <defaults>
</compile_context>

<pallas_src>
import functools

import jax
import jax.numpy as jnp
import numpy as np
from jax.experimental import pallas as pl
from jax.experimental.pallas import tpu as pltpu


def _self_attn_kernel(x_ref, wqkv_ref, bqkv_ref, wfc_ref, bfc_ref, o_ref, *,
                      n_heads, batch, seq, hid):
    d = hid // n_heads
    BS = batch * seq
    hpad = wfc_ref.shape[1]

    # Single fused projection matmul (one MXU push):
    #   rows [0:BS) = query, [BS:2BS) = key, [2BS:3BS) = value
    #   cols [0:H)  = w_q (pre-scaled by 1/sqrt(d)), [H:2H) = w_k, [2H:3H) = w_v
    proj = jnp.dot(x_ref[...], wqkv_ref[...],
                   preferred_element_type=jnp.float32) + bqkv_ref[...]

    q_all = proj[0:BS, 0:hid]                  # (BS, H), already * 1/sqrt(d)
    k_all = proj[BS:2 * BS, hid:2 * hid]       # (BS, H)
    v_all = proj[2 * BS:3 * BS, 2 * hid:3 * hid]  # (BS, H)

    wfc = wfc_ref[...]                         # (H, Hpad), cols >= H are zero
    bfc = bfc_ref[...]                         # (1, Hpad)

    # Static loops over batch / head with static slices: no reshape/transpose
    # relayouts, n_heads and batch are compile-time constants.
    for b in range(batch):
        r0 = b * seq
        acc = jnp.zeros((seq, hpad), jnp.float32)
        for h in range(n_heads):
            c0 = h * d
            qh = q_all[r0:r0 + seq, c0:c0 + d]     # (S, d)
            kh = k_all[r0:r0 + seq, c0:c0 + d]     # (S, d)
            vh = v_all[r0:r0 + seq, c0:c0 + d]     # (S, d)

            # energy = (Q / sqrt(d)) @ K^T   (contraction over d)
            e = jax.lax.dot_general(qh, kh, (((1,), (1,)), ((), ())),
                                    preferred_element_type=jnp.float32)  # (S,S)
            m = jnp.max(e, axis=-1, keepdims=True)
            p = jnp.exp(e - m)
            attn = p * pl.reciprocal(jnp.sum(p, axis=-1, keepdims=True),
                                     approx=True)
            ctx = jnp.dot(attn, vh, preferred_element_type=jnp.float32)  # (S,d)

            # Head merge + output projection fused:
            #   x @ W_fc^T == sum_h ctx_h @ W_fc^T[h*d:(h+1)*d, :]
            acc = acc + jnp.dot(ctx, wfc[c0:c0 + d, :],
                                preferred_element_type=jnp.float32)

        o_ref[r0:r0 + seq, :] = (acc + bfc).astype(o_ref.dtype)


def self_attention(query, key, value, params, n_heads):
    """query/key/value: (B, S, H) float32. params: dict of weights (PyTorch layout)."""
    B, S, H = query.shape
    assert H % n_heads == 0
    d = H // n_heads
    scale = np.sqrt(np.float32(d))
    hpad = ((H + 127) // 128) * 128            # lane-dense output width

    # PyTorch nn.Linear: y = x @ W.T + b  ->  pre-transpose; fold 1/sqrt(d) into
    # w_q / b_q; concatenate the three projections into one (H, 3H) weight.
    wq_t = params['w_q'].T / scale
    wk_t = params['w_k'].T
    wv_t = params['w_v'].T
    wqkv = jnp.concatenate([wq_t, wk_t, wv_t], axis=1)               # (H, 3H)
    bqkv = jnp.concatenate([params['b_q'] / scale,
                            params['b_k'],
                            params['b_v']]).reshape(1, 3 * H)        # (1, 3H)

    # Zero-pad the output projection to a 128-multiple lane width so in-kernel
    # stores are unmasked (lane-dense); wrapper slices the padding back off.
    wfc_t = jnp.zeros((H, hpad), jnp.float32).at[:, :H].set(params['fc'].T)
    bfc = jnp.zeros((1, hpad), jnp.float32).at[:, :H].set(params['b_fc'])

    # Stack query/key/value rows so the projection is a single matmul.
    x = jnp.concatenate([query.reshape(B * S, H),
                         key.reshape(B * S, H),
                         value.reshape(B * S, H)], axis=0)           # (3BS, H)

    kernel = functools.partial(_self_attn_kernel, n_heads=n_heads,
                               batch=B, seq=S, hid=H)

    cost = pl.CostEstimate(
        flops=(2 * (3 * B * S) * H * (3 * H)                          # fused proj
               + B * n_heads * (4 * S * S * d + 2 * S * d * hpad)),   # attn + fc
        transcendentals=B * n_heads * S * (S + 1),                    # exp + recip
        bytes_accessed=4 * (3 * B * S * H + H * 3 * H + 3 * H
                            + H * hpad + hpad + B * S * hpad),
    )

    out = pl.pallas_call(
        kernel,
        out_shape=jax.ShapeDtypeStruct((B * S, hpad), jnp.float32),
        grid_spec=pltpu.PrefetchScalarGridSpec(
            num_scalar_prefetch=0,
            grid=(1,),   # whole problem in one step; per-step overhead dominates
                         # at these shapes.  (On v7x with larger B, use a
                         # leading "parallel" batch axis to split across TCs.)
            in_specs=[pl.BlockSpec((3 * B * S, H), lambda i: (0, 0)),
                      pl.BlockSpec((H, 3 * H), lambda i: (0, 0)),
                      pl.BlockSpec((1, 3 * H), lambda i: (0, 0)),
                      pl.BlockSpec((H, hpad), lambda i: (0, 0)),
                      pl.BlockSpec((1, hpad), lambda i: (0, 0))],
            out_specs=pl.BlockSpec((B * S, hpad), lambda i: (0, 0)),
        ),
        compiler_params=pltpu.CompilerParams(
            dimension_semantics=("arbitrary",)),
        cost_estimate=cost,
    )(x, wqkv, bqkv, wfc_t, bfc)

    # Drop lane padding, restore (B, S, H).
    return out[:, :H].reshape(B, S, H)


def _reference(query, key, value, params, n_heads):
    """Pure-JAX replica of the PyTorch forward (eval mode, mask=None)."""
    B, S, H = query.shape
    d = H // n_heads
    scale = jnp.sqrt(jnp.float32(d))

    def lin(x, w, b):
        return x @ w.T + b

    Q = lin(query, params['w_q'], params['b_q'])
    K = lin(key, params['w_k'], params['b_k'])
    V = lin(value, params['w_v'], params['b_v'])
    Q = Q.reshape(B, S, n_heads, d).transpose(0, 2, 1, 3)
    K = K.reshape(B, S, n_heads, d).transpose(0, 2, 1, 3)
    V = V.reshape(B, S, n_heads, d).transpose(0, 2, 1, 3)
    energy = jnp.einsum('bhqd,bhkd->bhqk', Q, K) / scale
    attn = jax.nn.softmax(energy, axis=-1)
    x = jnp.einsum('bhqk,bhkd->bhqd', attn, V)
    x = x.transpose(0, 2, 1, 3).reshape(B, S, H)
    return lin(x, params['fc'], params['b_fc'])


if __name__ == "__main__":
    B, S, H, NH = 2, 8, 32, 4   # batch, seq, hid_dim, n_heads (dropout=0 / eval)

    key = jax.random.PRNGKey(0)
    ks = jax.random.split(key, 12)
    params = {
        'w_q': jax.random.normal(ks[0], (H, H), jnp.float32) * 0.1,
        'b_q': jax.random.normal(ks[1], (H,), jnp.float32) * 0.1,
        'w_k': jax.random.normal(ks[2], (H, H), jnp.float32) * 0.1,
        'b_k': jax.random.normal(ks[3], (H,), jnp.float32) * 0.1,
        'w_v': jax.random.normal(ks[4], (H, H), jnp.float32) * 0.1,
        'b_v': jax.random.normal(ks[5], (H,), jnp.float32) * 0.1,
        'fc':  jax.random.normal(ks[6], (H, H), jnp.float32) * 0.1,
        'b_fc': jax.random.normal(ks[7], (H,), jnp.float32) * 0.1,
    }
    query = jax.random.normal(ks[8], (B, S, H), jnp.float32)
    key_in = jax.random.normal(ks[9], (B, S, H), jnp.float32)
    value = jax.random.normal(ks[10], (B, S, H), jnp.float32)

    out = self_attention(query, key_in, value, params, NH)
    out = jax.block_until_ready(out)

    ref = _reference(query, key_in, value, params, NH)
    # Tolerance loosened vs. 1e-5 because the softmax normalization now uses the
    # EUP approximate reciprocal (pl.reciprocal(approx=True)).
    np.testing.assert_allclose(np.asarray(out), np.asarray(ref),
                               rtol=1e-2, atol=1e-2)
    print("KERNEL_OK")
</pallas_src>

<mosaic_0001>
module attributes {stable_mosaic.version = 11 : i64} {
  func.func @_self_attn_kernel(%arg0: i32, %arg1: memref<48x32xf32, #tpu.memory_space<vmem>>, %arg2: memref<32x96xf32, #tpu.memory_space<vmem>>, %arg3: memref<1x96xf32, #tpu.memory_space<vmem>>, %arg4: memref<32x128xf32, #tpu.memory_space<vmem>>, %arg5: memref<1x128xf32, #tpu.memory_space<vmem>>, %arg6: memref<16x128xf32, #tpu.memory_space<vmem>>) attributes {dimension_semantics = [#tpu.dimension_semantics<arbitrary>], iteration_bounds = array<i64: 1>, scalar_prefetch = 0 : i64, scratch_operands = 0 : i64, tpu.core_type = #tpu.core_type<tc>, window_params = [{pipeline_mode = #tpu.pipeline_mode<synchronous>, transform_indices = @transform_0, window_bounds = array<i64: 48, 32>}, {pipeline_mode = #tpu.pipeline_mode<synchronous>, transform_indices = @transform_1, window_bounds = array<i64: 32, 96>}, {pipeline_mode = #tpu.pipeline_mode<synchronous>, transform_indices = @transform_2, window_bounds = array<i64: 1, 96>}, {pipeline_mode = #tpu.pipeline_mode<synchronous>, transform_indices = @transform_3, window_bounds = array<i64: 32, 128>}, {pipeline_mode = #tpu.pipeline_mode<synchronous>, transform_indices = @transform_4, window_bounds = array<i64: 1, 128>}, {pipeline_mode = #tpu.pipeline_mode<synchronous>, transform_indices = @transform_5, window_bounds = array<i64: 16, 128>}]} {
    %c0 = arith.constant 0 : index
    %c0_0 = arith.constant 0 : index
    %0 = vector.load %arg1[%c0, %c0_0] : memref<48x32xf32, #tpu.memory_space<vmem>>, vector<48x32xf32>
    %c0_1 = arith.constant 0 : index
    %c0_2 = arith.constant 0 : index
    %1 = vector.load %arg2[%c0_1, %c0_2] : memref<32x96xf32, #tpu.memory_space<vmem>>, vector<32x96xf32>
    %cst = arith.constant dense<0.000000e+00> : vector<48x96xf32>
    %2 = tpu.matmul %0, %1, %cst {dimension_numbers = #tpu.dot_dimension_numbers<[1], [0], [0], [1], [0, 0, 1, 1], [], []>} : vector<48x32xf32>, vector<32x96xf32>, vector<48x96xf32> -> vector<48x96xf32>
    %c0_3 = arith.constant 0 : index
    %c0_4 = arith.constant 0 : index
    %3 = vector.load %arg3[%c0_3, %c0_4] : memref<1x96xf32, #tpu.memory_space<vmem>>, vector<1x96xf32>
    %4 = vector.broadcast %3 : vector<1x96xf32> to vector<48x96xf32>
    %5 = arith.addf %2, %4 : vector<48x96xf32>
    %6 = vector.extract_strided_slice %5 {offsets = [0, 0], sizes = [16, 32], strides = [1, 1]} : vector<48x96xf32> to vector<16x32xf32>
    %7 = vector.extract_strided_slice %5 {offsets = [16, 32], sizes = [16, 32], strides = [1, 1]} : vector<48x96xf32> to vector<16x32xf32>
    %8 = vector.extract_strided_slice %5 {offsets = [32, 64], sizes = [16, 32], strides = [1, 1]} : vector<48x96xf32> to vector<16x32xf32>
    %c0_5 = arith.constant 0 : index
    %c0_6 = arith.constant 0 : index
    %9 = vector.load %arg4[%c0_5, %c0_6] : memref<32x128xf32, #tpu.memory_space<vmem>>, vector<32x128xf32>
    %c0_7 = arith.constant 0 : index
    %c0_8 = arith.constant 0 : index
    %10 = vector.load %arg5[%c0_7, %c0_8] : memref<1x128xf32, #tpu.memory_space<vmem>>, vector<1x128xf32>
    %cst_9 = arith.constant 0.000000e+00 : f32
    %11 = vector.broadcast %cst_9 : f32 to vector<8x128xf32>
    %12 = vector.extract_strided_slice %6 {offsets = [0, 0], sizes = [8, 8], strides = [1, 1]} : vector<16x32xf32> to vector<8x8xf32>
    %13 = vector.extract_strided_slice %7 {offsets = [0, 0], sizes = [8, 8], strides = [1, 1]} : vector<16x32xf32> to vector<8x8xf32>
    %14 = vector.extract_strided_slice %8 {offsets = [0, 0], sizes = [8, 8], strides = [1, 1]} : vector<16x32xf32> to vector<8x8xf32>
    %cst_10 = arith.constant dense<0.000000e+00> : vector<8x8xf32>
    %15 = tpu.matmul %12, %13, %cst_10 {dimension_numbers = #tpu.dot_dimension_numbers<[1], [1], [0], [0], [0, 0, 1, 0], [], []>} : vector<8x8xf32>, vector<8x8xf32>, vector<8x8xf32> -> vector<8x8xf32>
    %cst_11 = arith.constant dense<0xFF800000> : vector<8xf32>
    %16 = vector.multi_reduction <maximumf>, %15, %cst_11 [1] : vector<8x8xf32> to vector<8xf32>
    %17 = vector.shape_cast %16 : vector<8xf32> to vector<8x1xf32>
    %18 = vector.broadcast %17 : vector<8x1xf32> to vector<8x8xf32>
    %19 = arith.subf %15, %18 : vector<8x8xf32>
    %20 = math.exp %19 : vector<8x8xf32>
    %cst_12 = arith.constant dense<0.000000e+00> : vector<8xf32>
    %21 = vector.multi_reduction <add>, %20, %cst_12 [1] : vector<8x8xf32> to vector<8xf32>
    %22 = vector.shape_cast %21 : vector<8xf32> to vector<8x1xf32>
    %23 = tpu.reciprocal %22 {approx = true} : vector<8x1xf32> -> vector<8x1xf32>
    %24 = vector.broadcast %23 : vector<8x1xf32> to vector<8x8xf32>
    %25 = arith.mulf %20, %24 : vector<8x8xf32>
    %cst_13 = arith.constant dense<0.000000e+00> : vector<8x8xf32>
    %26 = tpu.matmul %25, %14, %cst_13 {dimension_numbers = #tpu.dot_dimension_numbers<[1], [0], [0], [1], [0, 0, 1, 1], [], []>} : vector<8x8xf32>, vector<8x8xf32>, vector<8x8xf32> -> vector<8x8xf32>
    %27 = vector.extract_strided_slice %9 {offsets = [0, 0], sizes = [8, 128], strides = [1, 1]} : vector<32x128xf32> to vector<8x128xf32>
    %cst_14 = arith.constant dense<0.000000e+00> : vector<8x128xf32>
    %28 = tpu.matmul %26, %27, %cst_14 {dimension_numbers = #tpu.dot_dimension_numbers<[1], [0], [0], [1], [0, 0, 1, 1], [], []>} : vector<8x8xf32>, vector<8x128xf32>, vector<8x128xf32> -> vector<8x128xf32>
    %29 = arith.addf %11, %28 : vector<8x128xf32>
    %30 = vector.extract_strided_slice %6 {offsets = [0, 8], sizes = [8, 8], strides = [1, 1]} : vector<16x32xf32> to vector<8x8xf32>
    %31 = vector.extract_strided_slice %7 {offsets = [0, 8], sizes = [8, 8], strides = [1, 1]} : vector<16x32xf32> to vector<8x8xf32>
    %32 = vector.extract_strided_slice %8 {offsets = [0, 8], sizes = [8, 8], strides = [1, 1]} : vector<16x32xf32> to vector<8x8xf32>
    %cst_15 = arith.constant dense<0.000000e+00> : vector<8x8xf32>
    %33 = tpu.matmul %30, %31, %cst_15 {dimension_numbers = #tpu.dot_dimension_numbers<[1], [1], [0], [0], [0, 0, 1, 0], [], []>} : vector<8x8xf32>, vector<8x8xf32>, vector<8x8xf32> -> vector<8x8xf32>
    %cst_16 = arith.constant dense<0xFF800000> : vector<8xf32>
    %34 = vector.multi_reduction <maximumf>, %33, %cst_16 [1] : vector<8x8xf32> to vector<8xf32>
    %35 = vector.shape_cast %34 : vector<8xf32> to vector<8x1xf32>
    %36 = vector.broadcast %35 : vector<8x1xf32> to vector<8x8xf32>
    %37 = arith.subf %33, %36 : vector<8x8xf32>
    %38 = math.exp %37 : vector<8x8xf32>
    %cst_17 = arith.constant dense<0.000000e+00> : vector<8xf32>
    %39 = vector.multi_reduction <add>, %38, %cst_17 [1] : vector<8x8xf32> to vector<8xf32>
    %40 = vector.shape_cast %39 : vector<8xf32> to vector<8x1xf32>
    %41 = tpu.reciprocal %40 {approx = true} : vector<8x1xf32> -> vector<8x1xf32>
    %42 = vector.broadcast %41 : vector<8x1xf32> to vector<8x8xf32>
    %43 = arith.mulf %38, %42 : vector<8x8xf32>
    %cst_18 = arith.constant dense<0.000000e+00> : vector<8x8xf32>
    %44 = tpu.matmul %43, %32, %cst_18 {dimension_numbers = #tpu.dot_dimension_numbers<[1], [0], [0], [1], [0, 0, 1, 1], [], []>} : vector<8x8xf32>, vector<8x8xf32>, vector<8x8xf32> -> vector<8x8xf32>
    %45 = vector.extract_strided_slice %9 {offsets = [8, 0], sizes = [8, 128], strides = [1, 1]} : vector<32x128xf32> to vector<8x128xf32>
    %cst_19 = arith.constant dense<0.000000e+00> : vector<8x128xf32>
    %46 = tpu.matmul %44, %45, %cst_19 {dimension_numbers = #tpu.dot_dimension_numbers<[1], [0], [0], [1], [0, 0, 1, 1], [], []>} : vector<8x8xf32>, vector<8x128xf32>, vector<8x128xf32> -> vector<8x128xf32>
    %47 = arith.addf %29, %46 : vector<8x128xf32>
    %48 = vector.extract_strided_slice %6 {offsets = [0, 16], sizes = [8, 8], strides = [1, 1]} : vector<16x32xf32> to vector<8x8xf32>
    %49 = vector.extract_strided_slice %7 {offsets = [0, 16], sizes = [8, 8], strides = [1, 1]} : vector<16x32xf32> to vector<8x8xf32>
    %50 = vector.extract_strided_slice %8 {offsets = [0, 16], sizes = [8, 8], strides = [1, 1]} : vector<16x32xf32> to vector<8x8xf32>
    %cst_20 = arith.constant dense<0.000000e+00> : vector<8x8xf32>
    %51 = tpu.matmul %48, %49, %cst_20 {dimension_numbers = #tpu.dot_dimension_numbers<[1], [1], [0], [0], [0, 0, 1, 0], [], []>} : vector<8x8xf32>, vector<8x8xf32>, vector<8x8xf32> -> vector<8x8xf32>
    %cst_21 = arith.constant dense<0xFF800000> : vector<8xf32>
    %52 = vector.multi_reduction <maximumf>, %51, %cst_21 [1] : vector<8x8xf32> to vector<8xf32>
    %53 = vector.shape_cast %52 : vector<8xf32> to vector<8x1xf32>
    %54 = vector.broadcast %53 : vector<8x1xf32> to vector<8x8xf32>
    %55 = arith.subf %51, %54 : vector<8x8xf32>
    %56 = math.exp %55 : vector<8x8xf32>
    %cst_22 = arith.constant dense<0.000000e+00> : vector<8xf32>
    %57 = vector.multi_reduction <add>, %56, %cst_22 [1] : vector<8x8xf32> to vector<8xf32>
    %58 = vector.shape_cast %57 : vector<8xf32> to vector<8x1xf32>
    %59 = tpu.reciprocal %58 {approx = true} : vector<8x1xf32> -> vector<8x1xf32>
    %60 = vector.broadcast %59 : vector<8x1xf32> to vector<8x8xf32>
    %61 = arith.mulf %56, %60 : vector<8x8xf32>
    %cst_23 = arith.constant dense<0.000000e+00> : vector<8x8xf32>
    %62 = tpu.matmul %61, %50, %cst_23 {dimension_numbers = #tpu.dot_dimension_numbers<[1], [0], [0], [1], [0, 0, 1, 1], [], []>} : vector<8x8xf32>, vector<8x8xf32>, vector<8x8xf32> -> vector<8x8xf32>
    %63 = vector.extract_strided_slice %9 {offsets = [16, 0], sizes = [8, 128], strides = [1, 1]} : vector<32x128xf32> to vector<8x128xf32>
    %cst_24 = arith.constant dense<0.000000e+00> : vector<8x128xf32>
    %64 = tpu.matmul %62, %63, %cst_24 {dimension_numbers = #tpu.dot_dimension_numbers<[1], [0], [0], [1], [0, 0, 1, 1], [], []>} : vector<8x8xf32>, vector<8x128xf32>, vector<8x128xf32> -> vector<8x128xf32>
    %65 = arith.addf %47, %64 : vector<8x128xf32>
    %66 = vector.extract_strided_slice %6 {offsets = [0, 24], sizes = [8, 8], strides = [1, 1]} : vector<16x32xf32> to vector<8x8xf32>
    %67 = vector.extract_strided_slice %7 {offsets = [0, 24], sizes = [8, 8], strides = [1, 1]} : vector<16x32xf32> to vector<8x8xf32>
    %68 = vector.extract_strided_slice %8 {offsets = [0, 24], sizes = [8, 8], strides = [1, 1]} : vector<16x32xf32> to vector<8x8xf32>
    %cst_25 = arith.constant dense<0.000000e+00> : vector<8x8xf32>
    %69 = tpu.matmul %66, %67, %cst_25 {dimension_numbers = #tpu.dot_dimension_numbers<[1], [1], [0], [0], [0, 0, 1, 0], [], []>} : vector<8x8xf32>, vector<8x8xf32>, vector<8x8xf32> -> vector<8x8xf32>
    %cst_26 = arith.constant dense<0xFF800000> : vector<8xf32>
    %70 = vector.multi_reduction <maximumf>, %69, %cst_26 [1] : vector<8x8xf32> to vector<8xf32>
    %71 = vector.shape_cast %70 : vector<8xf32> to vector<8x1xf32>
    %72 = vector.broadcast %71 : vector<8x1xf32> to vector<8x8xf32>
    %73 = arith.subf %69, %72 : vector<8x8xf32>
    %74 = math.exp %73 : vector<8x8xf32>
    %cst_27 = arith.constant dense<0.000000e+00> : vector<8xf32>
    %75 = vector.multi_reduction <add>, %74, %cst_27 [1] : vector<8x8xf32> to vector<8xf32>
    %76 = vector.shape_cast %75 : vector<8xf32> to vector<8x1xf32>
    %77 = tpu.reciprocal %76 {approx = true} : vector<8x1xf32> -> vector<8x1xf32>
    %78 = vector.broadcast %77 : vector<8x1xf32> to vector<8x8xf32>
    %79 = arith.mulf %74, %78 : vector<8x8xf32>
    %cst_28 = arith.constant dense<0.000000e+00> : vector<8x8xf32>
    %80 = tpu.matmul %79, %68, %cst_28 {dimension_numbers = #tpu.dot_dimension_numbers<[1], [0], [0], [1], [0, 0, 1, 1], [], []>} : vector<8x8xf32>, vector<8x8xf32>, vector<8x8xf32> -> vector<8x8xf32>
    %81 = vector.extract_strided_slice %9 {offsets = [24, 0], sizes = [8, 128], strides = [1, 1]} : vector<32x128xf32> to vector<8x128xf32>
    %cst_29 = arith.constant dense<0.000000e+00> : vector<8x128xf32>
    %82 = tpu.matmul %80, %81, %cst_29 {dimension_numbers = #tpu.dot_dimension_numbers<[1], [0], [0], [1], [0, 0, 1, 1], [], []>} : vector<8x8xf32>, vector<8x128xf32>, vector<8x128xf32> -> vector<8x128xf32>
    %83 = arith.addf %65, %82 : vector<8x128xf32>
    %84 = vector.broadcast %10 : vector<1x128xf32> to vector<8x128xf32>
    %85 = arith.addf %83, %84 : vector<8x128xf32>
    %c0_30 = arith.constant 0 : index
    %c0_31 = arith.constant 0 : index
    %86 = vector.load %arg6[%c0_30, %c0_31] : memref<16x128xf32, #tpu.memory_space<vmem>>, vector<8x128xf32>
    tpu.vector_store %arg6[%c0_30, %c0_31], %85 {strides = array<i32>} : memref<16x128xf32, #tpu.memory_space<vmem>>, vector<8x128xf32>,
    %cst_32 = arith.constant 0.000000e+00 : f32
    %87 = vector.broadcast %cst_32 : f32 to vector<8x128xf32>
    %88 = vector.extract_strided_slice %6 {offsets = [8, 0], sizes = [8, 8], strides = [1, 1]} : vector<16x32xf32> to vector<8x8xf32>
    %89 = vector.extract_strided_slice %7 {offsets = [8, 0], sizes = [8, 8], strides = [1, 1]} : vector<16x32xf32> to vector<8x8xf32>
    %90 = vector.extract_strided_slice %8 {offsets = [8, 0], sizes = [8, 8], strides = [1, 1]} : vector<16x32xf32> to vector<8x8xf32>
    %cst_33 = arith.constant dense<0.000000e+00> : vector<8x8xf32>
    %91 = tpu.matmul %88, %89, %cst_33 {dimension_numbers = #tpu.dot_dimension_numbers<[1], [1], [0], [0], [0, 0, 1, 0], [], []>} : vector<8x8xf32>, vector<8x8xf32>, vector<8x8xf32> -> vector<8x8xf32>
    %cst_34 = arith.constant dense<0xFF800000> : vector<8xf32>
    %92 = vector.multi_reduction <maximumf>, %91, %cst_34 [1] : vector<8x8xf32> to vector<8xf32>
    %93 = vector.shape_cast %92 : vector<8xf32> to vector<8x1xf32>
    %94 = vector.broadcast %93 : vector<8x1xf32> to vector<8x8xf32>
    %95 = arith.subf %91, %94 : vector<8x8xf32>
    %96 = math.exp %95 : vector<8x8xf32>
    %cst_35 = arith.constant dense<0.000000e+00> : vector<8xf32>
    %97 = vector.multi_reduction <add>, %96, %cst_35 [1] : vector<8x8xf32> to vector<8xf32>
    %98 = vector.shape_cast %97 : vector<8xf32> to vector<8x1xf32>
    %99 = tpu.reciprocal %98 {approx = true} : vector<8x1xf32> -> vector<8x1xf32>
    %100 = vector.broadcast %99 : vector<8x1xf32> to vector<8x8xf32>
    %101 = arith.mulf %96, %100 : vector<8x8xf32>
    %cst_36 = arith.constant dense<0.000000e+00> : vector<8x8xf32>
    %102 = tpu.matmul %101, %90, %cst_36 {dimension_numbers = #tpu.dot_dimension_numbers<[1], [0], [0], [1], [0, 0, 1, 1], [], []>} : vector<8x8xf32>, vector<8x8xf32>, vector<8x8xf32> -> vector<8x8xf32>
    %103 = vector.extract_strided_slice %9 {offsets = [0, 0], sizes = [8, 128], strides = [1, 1]} : vector<32x128xf32> to vector<8x128xf32>
    %cst_37 = arith.constant dense<0.000000e+00> : vector<8x128xf32>
    %104 = tpu.matmul %102, %103, %cst_37 {dimension_numbers = #tpu.dot_dimension_numbers<[1], [0], [0], [1], [0, 0, 1, 1], [], []>} : vector<8x8xf32>, vector<8x128xf32>, vector<8x128xf32> -> vector<8x128xf32>
    %105 = arith.addf %87, %104 : vector<8x128xf32>
    %106 = vector.extract_strided_slice %6 {offsets = [8, 8], sizes = [8, 8], strides = [1, 1]} : vector<16x32xf32> to vector<8x8xf32>
    %107 = vector.extract_strided_slice %7 {offsets = [8, 8], sizes = [8, 8], strides = [1, 1]} : vector<16x32xf32> to vector<8x8xf32>
    %108 = vector.extract_strided_slice %8 {offsets = [8, 8], sizes = [8, 8], strides = [1, 1]} : vector<16x32xf32> to vector<8x8xf32>
    %cst_38 = arith.constant dense<0.000000e+00> : vector<8x8xf32>
    %109 = tpu.matmul %106, %107, %cst_38 {dimension_numbers = #tpu.dot_dimension_numbers<[1], [1], [0], [0], [0, 0, 1, 0], [], []>} : vector<8x8xf32>, vector<8x8xf32>, vector<8x8xf32> -> vector<8x8xf32>
    %cst_39 = arith.constant dense<0xFF800000> : vector<8xf32>
    %110 = vector.multi_reduction <maximumf>, %109, %cst_39 [1] : vector<8x8xf32> to vector<8xf32>
    %111 = vector.shape_cast %110 : vector<8xf32> to vector<8x1xf32>
    %112 = vector.broadcast %111 : vector<8x1xf32> to vector<8x8xf32>
    %113 = arith.subf %109, %112 : vector<8x8xf32>
    %114 = math.exp %113 : vector<8x8xf32>
    %cst_40 = arith.constant dense<0.000000e+00> : vector<8xf32>
    %115 = vector.multi_reduction <add>, %114, %cst_40 [1] : vector<8x8xf32> to vector<8xf32>
    %116 = vector.shape_cast %115 : vector<8xf32> to vector<8x1xf32>
    %117 = tpu.reciprocal %116 {approx = true} : vector<8x1xf32> -> vector<8x1xf32>
    %118 = vector.broadcast %117 : vector<8x1xf32> to vector<8x8xf32>
    %119 = arith.mulf %114, %118 : vector<8x8xf32>
    %cst_41 = arith.constant dense<0.000000e+00> : vector<8x8xf32>
    %120 = tpu.matmul %119, %108, %cst_41 {dimension_numbers = #tpu.dot_dimension_numbers<[1], [0], [0], [1], [0, 0, 1, 1], [], []>} : vector<8x8xf32>, vector<8x8xf32>, vector<8x8xf32> -> vector<8x8xf32>
    %121 = vector.extract_strided_slice %9 {offsets = [8, 0], sizes = [8, 128], strides = [1, 1]} : vector<32x128xf32> to vector<8x128xf32>
    %cst_42 = arith.constant dense<0.000000e+00> : vector<8x128xf32>
    %122 = tpu.matmul %120, %121, %cst_42 {dimension_numbers = #tpu.dot_dimension_numbers<[1], [0], [0], [1], [0, 0, 1, 1], [], []>} : vector<8x8xf32>, vector<8x128xf32>, vector<8x128xf32> -> vector<8x128xf32>
    %123 = arith.addf %105, %122 : vector<8x128xf32>
    %124 = vector.extract_strided_slice %6 {offsets = [8, 16], sizes = [8, 8], strides = [1, 1]} : vector<16x32xf32> to vector<8x8xf32>
    %125 = vector.extract_strided_slice %7 {offsets = [8, 16], sizes = [8, 8], strides = [1, 1]} : vector<16x32xf32> to vector<8x8xf32>
    %126 = vector.extract_strided_slice %8 {offsets = [8, 16], sizes = [8, 8], strides = [1, 1]} : vector<16x32xf32> to vector<8x8xf32>
    %cst_43 = arith.constant dense<0.000000e+00> : vector<8x8xf32>
    %127 = tpu.matmul %124, %125, %cst_43 {dimension_numbers = #tpu.dot_dimension_numbers<[1], [1], [0], [0], [0, 0, 1, 0], [], []>} : vector<8x8xf32>, vector<8x8xf32>, vector<8x8xf32> -> vector<8x8xf32>
    %cst_44 = arith.constant dense<0xFF800000> : vector<8xf32>
    %128 = vector.multi_reduction <maximumf>, %127, %cst_44 [1] : vector<8x8xf32> to vector<8xf32>
    %129 = vector.shape_cast %128 : vector<8xf32> to vector<8x1xf32>
    %130 = vector.broadcast %129 : vector<8x1xf32> to vector<8x8xf32>
    %131 = arith.subf %127, %130 : vector<8x8xf32>
    %132 = math.exp %131 : vector<8x8xf32>
    %cst_45 = arith.constant dense<0.000000e+00> : vector<8xf32>
    %133 = vector.multi_reduction <add>, %132, %cst_45 [1] : vector<8x8xf32> to vector<8xf32>
    %134 = vector.shape_cast %133 : vector<8xf32> to vector<8x1xf32>
    %135 = tpu.reciprocal %134 {approx = true} : vector<8x1xf32> -> vector<8x1xf32>
    %136 = vector.broadcast %135 : vector<8x1xf32> to vector<8x8xf32>
    %137 = arith.mulf %132, %136 : vector<8x8xf32>
    %cst_46 = arith.constant dense<0.000000e+00> : vector<8x8xf32>
    %138 = tpu.matmul %137, %126, %cst_46 {dimension_numbers = #tpu.dot_dimension_numbers<[1], [0], [0], [1], [0, 0, 1, 1], [], []>} : vector<8x8xf32>, vector<8x8xf32>, vector<8x8xf32> -> vector<8x8xf32>
    %139 = vector.extract_strided_slice %9 {offsets = [16, 0], sizes = [8, 128], strides = [1, 1]} : vector<32x128xf32> to vector<8x128xf32>
    %cst_47 = arith.constant dense<0.000000e+00> : vector<8x128xf32>
    %140 = tpu.matmul %138, %139, %cst_47 {dimension_numbers = #tpu.dot_dimension_numbers<[1], [0], [0], [1], [0, 0, 1, 1], [], []>} : vector<8x8xf32>, vector<8x128xf32>, vector<8x128xf32> -> vector<8x128xf32>
    %141 = arith.addf %123, %140 : vector<8x128xf32>
    %142 = vector.extract_strided_slice %6 {offsets = [8, 24], sizes = [8, 8], strides = [1, 1]} : vector<16x32xf32> to vector<8x8xf32>
    %143 = vector.extract_strided_slice %7 {offsets = [8, 24], sizes = [8, 8], strides = [1, 1]} : vector<16x32xf32> to vector<8x8xf32>
    %144 = vector.extract_strided_slice %8 {offsets = [8, 24], sizes = [8, 8], strides = [1, 1]} : vector<16x32xf32> to vector<8x8xf32>
    %cst_48 = arith.constant dense<0.000000e+00> : vector<8x8xf32>
    %145 = tpu.matmul %142, %143, %cst_48 {dimension_numbers = #tpu.dot_dimension_numbers<[1], [1], [0], [0], [0, 0, 1, 0], [], []>} : vector<8x8xf32>, vector<8x8xf32>, vector<8x8xf32> -> vector<8x8xf32>
    %cst_49 = arith.constant dense<0xFF800000> : vector<8xf32>
    %146 = vector.multi_reduction <maximumf>, %145, %cst_49 [1] : vector<8x8xf32> to vector<8xf32>
    %147 = vector.shape_cast %146 : vector<8xf32> to vector<8x1xf32>
    %148 = vector.broadcast %147 : vector<8x1xf32> to vector<8x8xf32>
    %149 = arith.subf %145, %148 : vector<8x8xf32>
    %150 = math.exp %149 : vector<8x8xf32>
    %cst_50 = arith.constant dense<0.000000e+00> : vector<8xf32>
    %151 = vector.multi_reduction <add>, %150, %cst_50 [1] : vector<8x8xf32> to vector<8xf32>
    %152 = vector.shape_cast %151 : vector<8xf32> to vector<8x1xf32>
    %153 = tpu.reciprocal %152 {approx = true} : vector<8x1xf32> -> vector<8x1xf32>
    %154 = vector.broadcast %153 : vector<8x1xf32> to vector<8x8xf32>
    %155 = arith.mulf %150, %154 : vector<8x8xf32>
    %cst_51 = arith.constant dense<0.000000e+00> : vector<8x8xf32>
    %156 = tpu.matmul %155, %144, %cst_51 {dimension_numbers = #tpu.dot_dimension_numbers<[1], [0], [0], [1], [0, 0, 1, 1], [], []>} : vector<8x8xf32>, vector<8x8xf32>, vector<8x8xf32> -> vector<8x8xf32>
    %157 = vector.extract_strided_slice %9 {offsets = [24, 0], sizes = [8, 128], strides = [1, 1]} : vector<32x128xf32> to vector<8x128xf32>
    %cst_52 = arith.constant dense<0.000000e+00> : vector<8x128xf32>
    %158 = tpu.matmul %156, %157, %cst_52 {dimension_numbers = #tpu.dot_dimension_numbers<[1], [0], [0], [1], [0, 0, 1, 1], [], []>} : vector<8x8xf32>, vector<8x128xf32>, vector<8x128xf32> -> vector<8x128xf32>
    %159 = arith.addf %141, %158 : vector<8x128xf32>
    %160 = vector.broadcast %10 : vector<1x128xf32> to vector<8x128xf32>
    %161 = arith.addf %159, %160 : vector<8x128xf32>
    %c8 = arith.constant 8 : index
    %c0_53 = arith.constant 0 : index
    %162 = vector.load %arg6[%c8, %c0_53] : memref<16x128xf32, #tpu.memory_space<vmem>>, vector<8x128xf32>
    tpu.vector_store %arg6[%c8, %c0_53], %161 {strides = array<i32>} : memref<16x128xf32, #tpu.memory_space<vmem>>, vector<8x128xf32>,
    return
  }
  func.func @transform_0(%arg0: i32) -> (i32, i32) {
    %c0_i32 = arith.constant 0 : i32
    %c0_i32_0 = arith.constant 0 : i32
    %c0_i32_1 = arith.constant 0 : i32
    return %c0_i32, %c0_i32_0 : i32, i32
  }
  func.func @transform_1(%arg0: i32) -> (i32, i32) {
    %c0_i32 = arith.constant 0 : i32
    %c0_i32_0 = arith.constant 0 : i32
    %c0_i32_1 = arith.constant 0 : i32
    return %c0_i32, %c0_i32_0 : i32, i32
  }
  func.func @transform_2(%arg0: i32) -> (i32, i32) {
    %c0_i32 = arith.constant 0 : i32
    %c0_i32_0 = arith.constant 0 : i32
    %c0_i32_1 = arith.constant 0 : i32
    return %c0_i32, %c0_i32_0 : i32, i32
  }
  func.func @transform_3(%arg0: i32) -> (i32, i32) {
    %c0_i32 = arith.constant 0 : i32
    %c0_i32_0 = arith.constant 0 : i32
    %c0_i32_1 = arith.constant 0 : i32
    return %c0_i32, %c0_i32_0 : i32, i32
  }
  func.func @transform_4(%arg0: i32) -> (i32, i32) {
    %c0_i32 = arith.constant 0 : i32
    %c0_i32_0 = arith.constant 0 : i32
    %c0_i32_1 = arith.constant 0 : i32
    return %c0_i32, %c0_i32_0 : i32, i32
  }
  func.func @transform_5(%arg0: i32) -> (i32, i32) {
    %c0_i32 = arith.constant 0 : i32
    %c0_i32_0 = arith.constant 0 : i32
    %c0_i32_1 = arith.constant 0 : i32
    return %c0_i32, %c0_i32_0 : i32, i32
  }
}

</mosaic_0001>

<llo_original>
// kernel: tpu_custom_call.1
$region0: #{tpu_custom_call.1}
  #allocation0 [shape = 'u32[]', space=smem, size = 0x4, offset = 0x4, fixed_abs, tag = 'smem constant byte address 0x4 - core index']
  #allocation1 [shape = 'u32[72,128]{1,0:T(1,128)}', space=vmem, size = 0x9000, scoped, tag = 'internal scratch']
  %s0 = inlined_call_operand.vmem [shape: f32[48,32], index: 0, kind: input, shape index: {}]
  %s1 = inlined_call_operand.vmem [shape: f32[32,96], index: 1, kind: input, shape index: {}]
  %s2 = inlined_call_operand.vmem [shape: f32[1,96], index: 2, kind: input, shape index: {}]
  %s3 = inlined_call_operand.vmem [shape: f32[32,128], index: 3, kind: input, shape index: {}]
  %s4 = inlined_call_operand.vmem [shape: f32[1,128], index: 4, kind: input, shape index: {}]
  %s5 = inlined_call_operand.hbm [shape: f32[16,128], index: 5, kind: output, shape index: {}]
  %s6 = sld [smem:[#allocation0]]
  $region30: #{tpu_custom_call.1} parent=0
    _
  %s8 = ssub.s32 1, %s6
  %s9 = scalar_select 0, %s8, %s6
  $region1: #{tpu_custom_call.1} parent=0
    #allocation2 [shape = 'u8[8192]{0}', space=vmem, size = 0x2000, scoped, tag = 'output window, operand 0, single buffered']
    #allocation3 [shape = 's32[1]{0}', space=sflag, size = 0x4, scoped, tag = 'scoped memory for tpu_custom_call.1']
    %10 = vsyncpa [#allocation3], 0
    // Predicated region
    $region2: #{tpu_custom_call.1} parent=1 // pred_check
      _
    $region3: #{tpu_custom_call.1} parent=1 // pred_check_branch
      %12 = sbr.rel (0) target = $region5
    $region4: #{tpu_custom_call.1} parent=1 // pred_region
      _
    $region5: #{tpu_custom_call.1} parent=1 // pred_fallthru
      _
    // Predicated region
    $region6: #{tpu_custom_call.1} parent=1 // pred_check
      _
    $region7: #{tpu_custom_call.1} parent=1 // pred_check_branch
      %14 = sbr.rel (0) target = $region9
    $region8: #{tpu_custom_call.1} parent=1 // pred_region
      _
    $region9: #{tpu_custom_call.1} parent=1 // pred_fallthru
      _
    // Predicated region
    $region10: #{tpu_custom_call.1} parent=1 // pred_check
      _
    $region11: #{tpu_custom_call.1} parent=1 // pred_check_branch
      %16 = sbr.rel (0) target = $region13
    $region12: #{tpu_custom_call.1} parent=1 // pred_region
      _
    $region13: #{tpu_custom_call.1} parent=1 // pred_fallthru
      _
    // Predicated region
    $region14: #{tpu_custom_call.1} parent=1 // pred_check
      _
    $region15: #{tpu_custom_call.1} parent=1 // pred_check_branch
      %18 = sbr.rel (0) target = $region17
    $region16: #{tpu_custom_call.1} parent=1 // pred_region
      _
    $region17: #{tpu_custom_call.1} parent=1 // pred_fallthru
      _
    // Predicated region
    $region18: #{tpu_custom_call.1} parent=1 // pred_check
      _
    $region19: #{tpu_custom_call.1} parent=1 // pred_check_branch
      %20 = sbr.rel (0) target = $region21
    $region20: #{tpu_custom_call.1} parent=1 // pred_region
      _
    $region21: #{tpu_custom_call.1} parent=1 // pred_fallthru
      _
    %v21 = vld [vmem:[%s0] sm:$0xff]
    %v22 = vld [vmem:[%s0 + $0x8] sm:$0xff]
    %v23 = vld [vmem:[%s0 + $0x10] sm:$0xff]
    %v24 = vld [vmem:[%s0 + $0x18] sm:$0xff]
    %v25 = vld [vmem:[%s0 + $0x20] sm:$0xff]
    %v26 = vld [vmem:[%s0 + $0x28] sm:$0xff]
    %v27 = vld [vmem:[%s1] sm:$0xff]
    %v28 = vld [vmem:[%s1 + $0x8] sm:$0xff]
    %v29 = vld [vmem:[%s1 + $0x10] sm:$0xff]
    %v30 = vld [vmem:[%s1 + $0x18] sm:$0xff]
    %v31 = vld [vmem:[%s2] sm:$0x1]
    %v33 = vperm.slane %v31, 0
    %vm35 = vcmask 261120
    %v37 = vsel %vm35, %v21, 0
    %v40 = vsel %vm35, %v22, 0
    %v43 = vsel %vm35, %v23, 0
    %v46 = vsel %vm35, %v24, 0
    %v49 = vsel %vm35, %v25, 0
    %v52 = vsel %vm35, %v26, 0
    %54 = vmatpush.msra.mxu0 0.0
    %55 = vmatpush.msra.mxu0 0.0
    %56 = vmatpush.msra.mxu0 0.0
    %57 = vmatpush.msra.mxu0 0.0
    %58 = vmatpush.msra.mxu0 0.0
    %59 = vmatpush.msra.mxu0 0.0
    %60 = vmatpush.msra.mxu0 0.0
    %61 = vmatpush.msra.mxu0 0.0
    %62 = vmatpush.msra.mxu0 0.0
    %63 = vmatpush.msra.mxu0 0.0
    %64 = vmatpush.msra.mxu0 0.0
    %65 = vmatpush.msra.mxu0 0.0
    %66 = vmatpush.msra.mxu0 %v30
    %67 = vmatpush.msra.mxu0 %v29
    %68 = vmatpush.msra.mxu0 %v28
    %69 = vmatpush.msra.mxu0 %v27
    %70 = vmatmul.f32.gmra.mxu0 %v37
    %v71 = vpop.f32.mrf.mxu0
    %v72 = vadd.f32 %v33, %v71
    %73 = vmatmul.f32.gmra.mxu0 %v40
    %v74 = vpop.f32.mrf.mxu0
    %v75 = vadd.f32 %v33, %v74
    %76 = vmatmul.f32.gmra.mxu0 %v43
    %v77 = vpop.f32.mrf.mxu0
    %v78 = vadd.f32 %v33, %v77
    %79 = vmatmul.f32.gmra.mxu0 %v46
    %v80 = vpop.f32.mrf.mxu0
    %v81 = vadd.f32 %v33, %v80
    %82 = vmatmul.f32.gmra.mxu0 %v49
    %v83 = vpop.f32.mrf.mxu0
    %v84 = vadd.f32 %v33, %v83
    %85 = vmatmul.f32.gmra.mxu0 %v52
    %v86 = vpop.f32.mrf.mxu0
    %v87 = vadd.f32 %v33, %v86
    %88 = vdwg.mxu0
    %v89 = vld [vmem:[%s3] sm:$0xff]
    %v90 = vld [vmem:[%s3 + $0x8] sm:$0xff]
    %v91 = vld [vmem:[%s3 + $0x10] sm:$0xff]
    %v92 = vld [vmem:[%s3 + $0x18] sm:$0xff]
    %v93 = vld [vmem:[%s4] sm:$0x1]
    %95 = vrot.lane.b32.xlu0 %v78, 96
    %v96 = vpop.permute.xlu0 %95
    %vm97 = vcmask 64512
    %v99 = vsel %vm97, %v72, 0
    %v101 = vsel %vm97, %v96, 0
    %103 = vmatpush.xpose.msra.mxu0 0.0
    %104 = vmatpush.xpose.msra.mxu0 0.0
    %105 = vmatpush.xpose.msra.mxu0 0.0
    %106 = vmatpush.xpose.msra.mxu0 0.0
    %107 = vmatpush.xpose.msra.mxu0 0.0
    %108 = vmatpush.xpose.msra.mxu0 0.0
    %109 = vmatpush.xpose.msra.mxu0 0.0
    %110 = vmatpush.xpose.msra.mxu0 0.0
    %111 = vmatpush.xpose.msra.mxu0 0.0
    %112 = vmatpush.xpose.msra.mxu0 0.0
    %113 = vmatpush.xpose.msra.mxu0 0.0
    %114 = vmatpush.xpose.msra.mxu0 0.0
    %115 = vmatpush.xpose.msra.mxu0 0.0
    %116 = vmatpush.xpose.msra.mxu0 0.0
    %117 = vmatpush.xpose.msra.mxu0 0.0
    %118 = vmatpush.xpose.msra.mxu0 %v101
    %119 = vmatmul.f32.gmra.mxu0 %v99
    %v120 = vpop.f32.mrf.mxu0
    %v121 = vadd.f32 0.0, %v120
    %122 = vdwg.mxu0
    %v123 = vsel %vm97, %v121, -inf
    %124 = vmax.xlane.f32.xlu0 %v123
    %v125 = vpop.xlane.xlu0 %124
    %v126 = vsub.f32 %v121, %v125
    %v127 = vmul.f32 %v126, 1.442695
    %v128 = vpow.pop %v127
    %v129 = vsel %vm97, %v128, 0.0
    %130 = vadd.xlane.f32.xlu0 %v129
    %v131 = vpop.xlane.xlu0 %130
    %v132 = vrcp.pop %v131
    %v133 = vmul.f32 %v128, %v132
    %135 = vrot.lane.b32.xlu0 %v84, 64
    %v136 = vpop.permute.xlu0 %135
    %v139 = vsel %vm97, %v133, 0
    %141 = vmatpush.msra.mxu0 0.0
    %142 = vmatpush.msra.mxu0 0.0
    %143 = vmatpush.msra.mxu0 0.0
    %144 = vmatpush.msra.mxu0 0.0
    %145 = vmatpush.msra.mxu0 0.0
    %146 = vmatpush.msra.mxu0 0.0
    %147 = vmatpush.msra.mxu0 0.0
    %148 = vmatpush.msra.mxu0 0.0
    %149 = vmatpush.msra.mxu0 0.0
    %150 = vmatpush.msra.mxu0 0.0
    %151 = vmatpush.msra.mxu0 0.0
    %152 = vmatpush.msra.mxu0 0.0
    %153 = vmatpush.msra.mxu0 0.0
    %154 = vmatpush.msra.mxu0 0.0
    %155 = vmatpush.msra.mxu0 0.0
    %156 = vmatpush.msra.mxu0 %v136
    %157 = vmatmul.f32.gmra.mxu0 %v139
    %v158 = vpop.f32.mrf.mxu0
    %v159 = vadd.f32 0.0, %v158
    %160 = vdwg.mxu0
    %161 = vrot.lane.b32.xlu0 %v72, 120
    %v162 = vpop.permute.xlu0 %161
    %163 = vrot.lane.b32.xlu0 %v78, 88
    %v164 = vpop.permute.xlu0 %163
    %v165 = vsel %vm97, %v162, 0
    %v167 = vsel %vm97, %v164, 0
    %169 = vmatpush.xpose.msra.mxu0 0.0
    %170 = vmatpush.xpose.msra.mxu0 0.0
    %171 = vmatpush.xpose.msra.mxu0 0.0
    %172 = vmatpush.xpose.msra.mxu0 0.0
    %173 = vmatpush.xpose.msra.mxu0 0.0
    %174 = vmatpush.xpose.msra.mxu0 0.0
    %175 = vmatpush.xpose.msra.mxu0 0.0
    %176 = vmatpush.xpose.msra.mxu0 0.0
    %177 = vmatpush.xpose.msra.mxu0 0.0
    %178 = vmatpush.xpose.msra.mxu0 0.0
    %179 = vmatpush.xpose.msra.mxu0 0.0
    %180 = vmatpush.xpose.msra.mxu0 0.0
    %181 = vmatpush.xpose.msra.mxu0 0.0
    %182 = vmatpush.xpose.msra.mxu0 0.0
    %183 = vmatpush.xpose.msra.mxu0 0.0
    %184 = vmatpush.xpose.msra.mxu0 %v167
    %185 = vmatmul.f32.gmra.mxu0 %v165
    %v186 = vpop.f32.mrf.mxu0
    %v187 = vadd.f32 0.0, %v186
    %188 = vdwg.mxu0
    %v189 = vsel %vm97, %v187, -inf
    %190 = vmax.xlane.f32.xlu0 %v189
    %v191 = vpop.xlane.xlu0 %190
    %v192 = vsub.f32 %v187, %v191
    %v193 = vmul.f32 %v192, 1.442695
    %v194 = vpow.pop %v193
    %v195 = vsel %vm97, %v194, 0.0
    %196 = vadd.xlane.f32.xlu0 %v195
    %v197 = vpop.xlane.xlu0 %196
    %v198 = vrcp.pop %v197
    %v199 = vmul.f32 %v194, %v198
    %200 = vrot.lane.b32.xlu0 %v84, 56
    %v201 = vpop.permute.xlu0 %200
    %v204 = vsel %vm97, %v199, 0
    %206 = vmatpush.msra.mxu0 0.0
    %207 = vmatpush.msra.mxu0 0.0
    %208 = vmatpush.msra.mxu0 0.0
    %209 = vmatpush.msra.mxu0 0.0
    %210 = vmatpush.msra.mxu0 0.0
    %211 = vmatpush.msra.mxu0 0.0
    %212 = vmatpush.msra.mxu0 0.0
    %213 = vmatpush.msra.mxu0 0.0
    %214 = vmatpush.msra.mxu0 0.0
    %215 = vmatpush.msra.mxu0 0.0
    %216 = vmatpush.msra.mxu0 0.0
    %217 = vmatpush.msra.mxu0 0.0
    %218 = vmatpush.msra.mxu0 0.0
    %219 = vmatpush.msra.mxu0 0.0
    %220 = vmatpush.msra.mxu0 0.0
    %221 = vmatpush.msra.mxu0 %v201
    %222 = vmatmul.f32.gmra.mxu0 %v204
    %v223 = vpop.f32.mrf.mxu0
    %v224 = vadd.f32 0.0, %v223
    %225 = vdwg.mxu0
    %v227 = vsel %vm97, %v224, 0
    %229 = vmatpush.msra.mxu0 0.0
    %230 = vmatpush.msra.mxu0 0.0
    %231 = vmatpush.msra.mxu0 0.0
    %232 = vmatpush.msra.mxu0 0.0
    %233 = vmatpush.msra.mxu0 0.0
    %234 = vmatpush.msra.mxu0 0.0
    %235 = vmatpush.msra.mxu0 0.0
    %236 = vmatpush.msra.mxu0 0.0
    %237 = vmatpush.msra.mxu0 0.0
    %238 = vmatpush.msra.mxu0 0.0
    %239 = vmatpush.msra.mxu0 0.0
    %240 = vmatpush.msra.mxu0 0.0
    %241 = vmatpush.msra.mxu0 0.0
    %242 = vmatpush.msra.mxu0 0.0
    %243 = vmatpush.msra.mxu0 0.0
    %244 = vmatpush.msra.mxu0 %v90
    %245 = vmatmul.f32.gmra.mxu0 %v227
    %v246 = vpop.f32.mrf.mxu0
    %v247 = vadd.f32 0.0, %v246
    %248 = vdwg.mxu0
    %v250 = vsel %vm97, %v159, 0
    %252 = vmatpush.msra.mxu0 0.0
    %253 = vmatpush.msra.mxu0 0.0
    %254 = vmatpush.msra.mxu0 0.0
    %255 = vmatpush.msra.mxu0 0.0
    %256 = vmatpush.msra.mxu0 0.0
    %257 = vmatpush.msra.mxu0 0.0
    %258 = vmatpush.msra.mxu0 0.0
    %259 = vmatpush.msra.mxu0 0.0
    %260 = vmatpush.msra.mxu0 0.0
    %261 = vmatpush.msra.mxu0 0.0
    %262 = vmatpush.msra.mxu0 0.0
    %263 = vmatpush.msra.mxu0 0.0
    %264 = vmatpush.msra.mxu0 0.0
    %265 = vmatpush.msra.mxu0 0.0
    %266 = vmatpush.msra.mxu0 0.0
    %267 = vmatpush.msra.mxu0 %v89
    %268 = vmatmul.f32.gmra.mxu0 %v250
    %v269 = vpop.f32.mrf.mxu0
    %v270 = vadd.f32 %v247, %v269
    %271 = vdwg.mxu0
    %272 = vrot.lane.b32.xlu0 %v72, 112
    %v273 = vpop.permute.xlu0 %272
    %274 = vrot.lane.b32.xlu0 %v78, 80
    %v275 = vpop.permute.xlu0 %274
    %v276 = vsel %vm97, %v273, 0
    %v278 = vsel %vm97, %v275, 0
    %280 = vmatpush.xpose.msra.mxu0 0.0
    %281 = vmatpush.xpose.msra.mxu0 0.0
    %282 = vmatpush.xpose.msra.mxu0 0.0
    %283 = vmatpush.xpose.msra.mxu0 0.0
    %284 = vmatpush.xpose.msra.mxu0 0.0
    %285 = vmatpush.xpose.msra.mxu0 0.0
    %286 = vmatpush.xpose.msra.mxu0 0.0
    %287 = vmatpush.xpose.msra.mxu0 0.0
    %288 = vmatpush.xpose.msra.mxu0 0.0
    %289 = vmatpush.xpose.msra.mxu0 0.0
    %290 = vmatpush.xpose.msra.mxu0 0.0
    %291 = vmatpush.xpose.msra.mxu0 0.0
    %292 = vmatpush.xpose.msra.mxu0 0.0
    %293 = vmatpush.xpose.msra.mxu0 0.0
    %294 = vmatpush.xpose.msra.mxu0 0.0
    %295 = vmatpush.xpose.msra.mxu0 %v278
    %296 = vmatmul.f32.gmra.mxu0 %v276
    %v297 = vpop.f32.mrf.mxu0
    %v298 = vadd.f32 0.0, %v297
    %299 = vdwg.mxu0
    %v300 = vsel %vm97, %v298, -inf
    %301 = vmax.xlane.f32.xlu0 %v300
    %v302 = vpop.xlane.xlu0 %301
    %v303 = vsub.f32 %v298, %v302
    %v304 = vmul.f32 %v303, 1.442695
    %v305 = vpow.pop %v304
    %v306 = vsel %vm97, %v305, 0.0
    %307 = vadd.xlane.f32.xlu0 %v306
    %v308 = vpop.xlane.xlu0 %307
    %v309 = vrcp.pop %v308
    %v310 = vmul.f32 %v305, %v309
    %311 = vrot.lane.b32.xlu0 %v84, 48
    %v312 = vpop.permute.xlu0 %311
    %v315 = vsel %vm97, %v310, 0
    %317 = vmatpush.msra.mxu0 0.0
    %318 = vmatpush.msra.mxu0 0.0
    %319 = vmatpush.msra.mxu0 0.0
    %320 = vmatpush.msra.mxu0 0.0
    %321 = vmatpush.msra.mxu0 0.0
    %322 = vmatpush.msra.mxu0 0.0
    %323 = vmatpush.msra.mxu0 0.0
    %324 = vmatpush.msra.mxu0 0.0
    %325 = vmatpush.msra.mxu0 0.0
    %326 = vmatpush.msra.mxu0 0.0
    %327 = vmatpush.msra.mxu0 0.0
    %328 = vmatpush.msra.mxu0 0.0
    %329 = vmatpush.msra.mxu0 0.0
    %330 = vmatpush.msra.mxu0 0.0
    %331 = vmatpush.msra.mxu0 0.0
    %332 = vmatpush.msra.mxu0 %v312
    %333 = vmatmul.f32.gmra.mxu0 %v315
    %v334 = vpop.f32.mrf.mxu0
    %v335 = vadd.f32 0.0, %v334
    %336 = vdwg.mxu0
    %v338 = vsel %vm97, %v335, 0
    %340 = vmatpush.msra.mxu0 0.0
    %341 = vmatpush.msra.mxu0 0.0
    %342 = vmatpush.msra.mxu0 0.0
    %343 = vmatpush.msra.mxu0 0.0
    %344 = vmatpush.msra.mxu0 0.0
    %345 = vmatpush.msra.mxu0 0.0
    %346 = vmatpush.msra.mxu0 0.0
    %347 = vmatpush.msra.mxu0 0.0
    %348 = vmatpush.msra.mxu0 0.0
    %349 = vmatpush.msra.mxu0 0.0
    %350 = vmatpush.msra.mxu0 0.0
    %351 = vmatpush.msra.mxu0 0.0
    %352 = vmatpush.msra.mxu0 0.0
    %353 = vmatpush.msra.mxu0 0.0
    %354 = vmatpush.msra.mxu0 0.0
    %355 = vmatpush.msra.mxu0 %v91
    %356 = vmatmul.f32.gmra.mxu0 %v338
    %v357 = vpop.f32.mrf.mxu0
    %v358 = vadd.f32 0.0, %v357
    %359 = vdwg.mxu0
    %v360 = vadd.f32 %v270, %v358
    %361 = vrot.lane.b32.xlu0 %v72, 104
    %v362 = vpop.permute.xlu0 %361
    %363 = vrot.lane.b32.xlu0 %v78, 72
    %v364 = vpop.permute.xlu0 %363
    %v365 = vsel %vm97, %v362, 0
    %v367 = vsel %vm97, %v364, 0
    %369 = vmatpush.xpose.msra.mxu0 0.0
    %370 = vmatpush.xpose.msra.mxu0 0.0
    %371 = vmatpush.xpose.msra.mxu0 0.0
    %372 = vmatpush.xpose.msra.mxu0 0.0
    %373 = vmatpush.xpose.msra.mxu0 0.0
    %374 = vmatpush.xpose.msra.mxu0 0.0
    %375 = vmatpush.xpose.msra.mxu0 0.0
    %376 = vmatpush.xpose.msra.mxu0 0.0
    %377 = vmatpush.xpose.msra.mxu0 0.0
    %378 = vmatpush.xpose.msra.mxu0 0.0
    %379 = vmatpush.xpose.msra.mxu0 0.0
    %380 = vmatpush.xpose.msra.mxu0 0.0
    %381 = vmatpush.xpose.msra.mxu0 0.0
    %382 = vmatpush.xpose.msra.mxu0 0.0
    %383 = vmatpush.xpose.msra.mxu0 0.0
    %384 = vmatpush.xpose.msra.mxu0 %v367
    %385 = vmatmul.f32.gmra.mxu0 %v365
    %v386 = vpop.f32.mrf.mxu0
    %v387 = vadd.f32 0.0, %v386
    %388 = vdwg.mxu0
    %v389 = vsel %vm97, %v387, -inf
    %390 = vmax.xlane.f32.xlu0 %v389
    %v391 = vpop.xlane.xlu0 %390
    %v392 = vsub.f32 %v387, %v391
    %v393 = vmul.f32 %v392, 1.442695
    %v394 = vpow.pop %v393
    %v395 = vsel %vm97, %v394, 0.0
    %396 = vadd.xlane.f32.xlu0 %v395
    %v397 = vpop.xlane.xlu0 %396
    %v398 = vrcp.pop %v397
    %v399 = vmul.f32 %v394, %v398
    %400 = vrot.lane.b32.xlu0 %v84, 40
    %v401 = vpop.permute.xlu0 %400
    %v404 = vsel %vm97, %v399, 0
    %406 = vmatpush.msra.mxu0 0.0
    %407 = vmatpush.msra.mxu0 0.0
    %408 = vmatpush.msra.mxu0 0.0
    %409 = vmatpush.msra.mxu0 0.0
    %410 = vmatpush.msra.mxu0 0.0
    %411 = vmatpush.msra.mxu0 0.0
    %412 = vmatpush.msra.mxu0 0.0
    %413 = vmatpush.msra.mxu0 0.0
    %414 = vmatpush.msra.mxu0 0.0
    %415 = vmatpush.msra.mxu0 0.0
    %416 = vmatpush.msra.mxu0 0.0
    %417 = vmatpush.msra.mxu0 0.0
    %418 = vmatpush.msra.mxu0 0.0
    %419 = vmatpush.msra.mxu0 0.0
    %420 = vmatpush.msra.mxu0 0.0
    %421 = vmatpush.msra.mxu0 %v401
    %422 = vmatmul.f32.gmra.mxu0 %v404
    %v423 = vpop.f32.mrf.mxu0
    %v424 = vadd.f32 0.0, %v423
    %425 = vdwg.mxu0
    %v427 = vsel %vm97, %v424, 0
    %429 = vmatpush.msra.mxu0 0.0
    %430 = vmatpush.msra.mxu0 0.0
    %431 = vmatpush.msra.mxu0 0.0
    %432 = vmatpush.msra.mxu0 0.0
    %433 = vmatpush.msra.mxu0 0.0
    %434 = vmatpush.msra.mxu0 0.0
    %435 = vmatpush.msra.mxu0 0.0
    %436 = vmatpush.msra.mxu0 0.0
    %437 = vmatpush.msra.mxu0 0.0
    %438 = vmatpush.msra.mxu0 0.0
    %439 = vmatpush.msra.mxu0 0.0
    %440 = vmatpush.msra.mxu0 0.0
    %441 = vmatpush.msra.mxu0 0.0
    %442 = vmatpush.msra.mxu0 0.0
    %443 = vmatpush.msra.mxu0 0.0
    %444 = vmatpush.msra.mxu0 %v92
    %445 = vmatmul.f32.gmra.mxu0 %v427
    %v446 = vpop.f32.mrf.mxu0
    %v447 = vadd.f32 0.0, %v446
    %448 = vdwg.mxu0
    %v449 = vadd.f32 %v360, %v447
    %v451 = vperm.slane %v93, 0
    %v453 = vadd.f32 %v449, %v451
    %454 = vst [vmem:[#allocation2] sm:$0xff] %v453
    %456 = vrot.lane.b32.xlu0 %v81, 96
    %v457 = vpop.permute.xlu0 %456
    %v459 = vsel %vm97, %v75, 0
    %v461 = vsel %vm97, %v457, 0
    %463 = vmatpush.xpose.msra.mxu0 0.0
    %464 = vmatpush.xpose.msra.mxu0 0.0
    %465 = vmatpush.xpose.msra.mxu0 0.0
    %466 = vmatpush.xpose.msra.mxu0 0.0
    %467 = vmatpush.xpose.msra.mxu0 0.0
    %468 = vmatpush.xpose.msra.mxu0 0.0
    %469 = vmatpush.xpose.msra.mxu0 0.0
    %470 = vmatpush.xpose.msra.mxu0 0.0
    %471 = vmatpush.xpose.msra.mxu0 0.0
    %472 = vmatpush.xpose.msra.mxu0 0.0
    %473 = vmatpush.xpose.msra.mxu0 0.0
    %474 = vmatpush.xpose.msra.mxu0 0.0
    %475 = vmatpush.xpose.msra.mxu0 0.0
    %476 = vmatpush.xpose.msra.mxu0 0.0
    %477 = vmatpush.xpose.msra.mxu0 0.0
    %478 = vmatpush.xpose.msra.mxu0 %v461
    %479 = vmatmul.f32.gmra.mxu0 %v459
    %v480 = vpop.f32.mrf.mxu0
    %v481 = vadd.f32 0.0, %v480
    %482 = vdwg.mxu0
    %v483 = vsel %vm97, %v481, -inf
    %484 = vmax.xlane.f32.xlu0 %v483
    %v485 = vpop.xlane.xlu0 %484
    %v486 = vsub.f32 %v481, %v485
    %v487 = vmul.f32 %v486, 1.442695
    %v488 = vpow.pop %v487
    %v489 = vsel %vm97, %v488, 0.0
    %490 = vadd.xlane.f32.xlu0 %v489
    %v491 = vpop.xlane.xlu0 %490
    %v492 = vrcp.pop %v491
    %v493 = vmul.f32 %v488, %v492
    %495 = vrot.lane.b32.xlu0 %v87, 64
    %v496 = vpop.permute.xlu0 %495
    %v499 = vsel %vm97, %v493, 0
    %501 = vmatpush.msra.mxu0 0.0
    %502 = vmatpush.msra.mxu0 0.0
    %503 = vmatpush.msra.mxu0 0.0
    %504 = vmatpush.msra.mxu0 0.0
    %505 = vmatpush.msra.mxu0 0.0
    %506 = vmatpush.msra.mxu0 0.0
    %507 = vmatpush.msra.mxu0 0.0
    %508 = vmatpush.msra.mxu0 0.0
    %509 = vmatpush.msra.mxu0 0.0
    %510 = vmatpush.msra.mxu0 0.0
    %511 = vmatpush.msra.mxu0 0.0
    %512 = vmatpush.msra.mxu0 0.0
    %513 = vmatpush.msra.mxu0 0.0
    %514 = vmatpush.msra.mxu0 0.0
    %515 = vmatpush.msra.mxu0 0.0
    %516 = vmatpush.msra.mxu0 %v496
    %517 = vmatmul.f32.gmra.mxu0 %v499
    %v518 = vpop.f32.mrf.mxu0
    %v519 = vadd.f32 0.0, %v518
    %520 = vdwg.mxu0
    %521 = vrot.lane.b32.xlu0 %v75, 120
    %v522 = vpop.permute.xlu0 %521
    %523 = vrot.lane.b32.xlu0 %v81, 88
    %v524 = vpop.permute.xlu0 %523
    %v525 = vsel %vm97, %v522, 0
    %v527 = vsel %vm97, %v524, 0
    %529 = vmatpush.xpose.msra.mxu0 0.0
    %530 = vmatpush.xpose.msra.mxu0 0.0
    %531 = vmatpush.xpose.msra.mxu0 0.0
    %532 = vmatpush.xpose.msra.mxu0 0.0
    %533 = vmatpush.xpose.msra.mxu0 0.0
    %534 = vmatpush.xpose.msra.mxu0 0.0
    %535 = vmatpush.xpose.msra.mxu0 0.0
    %536 = vmatpush.xpose.msra.mxu0 0.0
    %537 = vmatpush.xpose.msra.mxu0 0.0
    %538 = vmatpush.xpose.msra.mxu0 0.0
    %539 = vmatpush.xpose.msra.mxu0 0.0
    %540 = vmatpush.xpose.msra.mxu0 0.0
    %541 = vmatpush.xpose.msra.mxu0 0.0
    %542 = vmatpush.xpose.msra.mxu0 0.0
    %543 = vmatpush.xpose.msra.mxu0 0.0
    %544 = vmatpush.xpose.msra.mxu0 %v527
    %545 = vmatmul.f32.gmra.mxu0 %v525
    %v546 = vpop.f32.mrf.mxu0
    %v547 = vadd.f32 0.0, %v546
    %548 = vdwg.mxu0
    %v549 = vsel %vm97, %v547, -inf
    %550 = vmax.xlane.f32.xlu0 %v549
    %v551 = vpop.xlane.xlu0 %550
    %v552 = vsub.f32 %v547, %v551
    %v553 = vmul.f32 %v552, 1.442695
    %v554 = vpow.pop %v553
    %v555 = vsel %vm97, %v554, 0.0
    %556 = vadd.xlane.f32.xlu0 %v555
    %v557 = vpop.xlane.xlu0 %556
    %v558 = vrcp.pop %v557
    %v559 = vmul.f32 %v554, %v558
    %560 = vrot.lane.b32.xlu0 %v87, 56
    %v561 = vpop.permute.xlu0 %560
    %v564 = vsel %vm97, %v559, 0
    %566 = vmatpush.msra.mxu0 0.0
    %567 = vmatpush.msra.mxu0 0.0
    %568 = vmatpush.msra.mxu0 0.0
    %569 = vmatpush.msra.mxu0 0.0
    %570 = vmatpush.msra.mxu0 0.0
    %571 = vmatpush.msra.mxu0 0.0
    %572 = vmatpush.msra.mxu0 0.0
    %573 = vmatpush.msra.mxu0 0.0
    %574 = vmatpush.msra.mxu0 0.0
    %575 = vmatpush.msra.mxu0 0.0
    %576 = vmatpush.msra.mxu0 0.0
    %577 = vmatpush.msra.mxu0 0.0
    %578 = vmatpush.msra.mxu0 0.0
    %579 = vmatpush.msra.mxu0 0.0
    %580 = vmatpush.msra.mxu0 0.0
    %581 = vmatpush.msra.mxu0 %v561
    %582 = vmatmul.f32.gmra.mxu0 %v564
    %v583 = vpop.f32.mrf.mxu0
    %v584 = vadd.f32 0.0, %v583
    %585 = vdwg.mxu0
    %v587 = vsel %vm97, %v584, 0
    %589 = vmatpush.msra.mxu0 0.0
    %590 = vmatpush.msra.mxu0 0.0
    %591 = vmatpush.msra.mxu0 0.0
    %592 = vmatpush.msra.mxu0 0.0
    %593 = vmatpush.msra.mxu0 0.0
    %594 = vmatpush.msra.mxu0 0.0
    %595 = vmatpush.msra.mxu0 0.0
    %596 = vmatpush.msra.mxu0 0.0
    %597 = vmatpush.msra.mxu0 0.0
    %598 = vmatpush.msra.mxu0 0.0
    %599 = vmatpush.msra.mxu0 0.0
    %600 = vmatpush.msra.mxu0 0.0
    %601 = vmatpush.msra.mxu0 0.0
    %602 = vmatpush.msra.mxu0 0.0
    %603 = vmatpush.msra.mxu0 0.0
    %604 = vmatpush.msra.mxu0 %v90
    %605 = vmatmul.f32.gmra.mxu0 %v587
    %v606 = vpop.f32.mrf.mxu0
    %v607 = vadd.f32 0.0, %v606
    %608 = vdwg.mxu0
    %v610 = vsel %vm97, %v519, 0
    %612 = vmatpush.msra.mxu0 0.0
    %613 = vmatpush.msra.mxu0 0.0
    %614 = vmatpush.msra.mxu0 0.0
    %615 = vmatpush.msra.mxu0 0.0
    %616 = vmatpush.msra.mxu0 0.0
    %617 = vmatpush.msra.mxu0 0.0
    %618 = vmatpush.msra.mxu0 0.0
    %619 = vmatpush.msra.mxu0 0.0
    %620 = vmatpush.msra.mxu0 0.0
    %621 = vmatpush.msra.mxu0 0.0
    %622 = vmatpush.msra.mxu0 0.0
    %623 = vmatpush.msra.mxu0 0.0
    %624 = vmatpush.msra.mxu0 0.0
    %625 = vmatpush.msra.mxu0 0.0
    %626 = vmatpush.msra.mxu0 0.0
    %627 = vmatpush.msra.mxu0 %v89
    %628 = vmatmul.f32.gmra.mxu0 %v610
    %v629 = vpop.f32.mrf.mxu0
    %v630 = vadd.f32 %v607, %v629
    %631 = vdwg.mxu0
    %632 = vrot.lane.b32.xlu0 %v75, 112
    %v633 = vpop.permute.xlu0 %632
    %634 = vrot.lane.b32.xlu0 %v81, 80
    %v635 = vpop.permute.xlu0 %634
    %v636 = vsel %vm97, %v633, 0
    %v638 = vsel %vm97, %v635, 0
    %640 = vmatpush.xpose.msra.mxu0 0.0
    %641 = vmatpush.xpose.msra.mxu0 0.0
    %642 = vmatpush.xpose.msra.mxu0 0.0
    %643 = vmatpush.xpose.msra.mxu0 0.0
    %644 = vmatpush.xpose.msra.mxu0 0.0
    %645 = vmatpush.xpose.msra.mxu0 0.0
    %646 = vmatpush.xpose.msra.mxu0 0.0
    %647 = vmatpush.xpose.msra.mxu0 0.0
    %648 = vmatpush.xpose.msra.mxu0 0.0
    %649 = vmatpush.xpose.msra.mxu0 0.0
    %650 = vmatpush.xpose.msra.mxu0 0.0
    %651 = vmatpush.xpose.msra.mxu0 0.0
    %652 = vmatpush.xpose.msra.mxu0 0.0
    %653 = vmatpush.xpose.msra.mxu0 0.0
    %654 = vmatpush.xpose.msra.mxu0 0.0
    %655 = vmatpush.xpose.msra.mxu0 %v638
    %656 = vmatmul.f32.gmra.mxu0 %v636
    %v657 = vpop.f32.mrf.mxu0
    %v658 = vadd.f32 0.0, %v657
    %659 = vdwg.mxu0
    %v660 = vsel %vm97, %v658, -inf
    %661 = vmax.xlane.f32.xlu0 %v660
    %v662 = vpop.xlane.xlu0 %661
    %v663 = vsub.f32 %v658, %v662
    %v664 = vmul.f32 %v663, 1.442695
    %v665 = vpow.pop %v664
    %v666 = vsel %vm97, %v665, 0.0
    %667 = vadd.xlane.f32.xlu0 %v666
    %v668 = vpop.xlane.xlu0 %667
    %v669 = vrcp.pop %v668
    %v670 = vmul.f32 %v665, %v669
    %671 = vrot.lane.b32.xlu0 %v87, 48
    %v672 = vpop.permute.xlu0 %671
    %v675 = vsel %vm97, %v670, 0
    %677 = vmatpush.msra.mxu0 0.0
    %678 = vmatpush.msra.mxu0 0.0
    %679 = vmatpush.msra.mxu0 0.0
    %680 = vmatpush.msra.mxu0 0.0
    %681 = vmatpush.msra.mxu0 0.0
    %682 = vmatpush.msra.mxu0 0.0
    %683 = vmatpush.msra.mxu0 0.0
    %684 = vmatpush.msra.mxu0 0.0
    %685 = vmatpush.msra.mxu0 0.0
    %686 = vmatpush.msra.mxu0 0.0
    %687 = vmatpush.msra.mxu0 0.0
    %688 = vmatpush.msra.mxu0 0.0
    %689 = vmatpush.msra.mxu0 0.0
    %690 = vmatpush.msra.mxu0 0.0
    %691 = vmatpush.msra.mxu0 0.0
    %692 = vmatpush.msra.mxu0 %v672
    %693 = vmatmul.f32.gmra.mxu0 %v675
    %v694 = vpop.f32.mrf.mxu0
    %v695 = vadd.f32 0.0, %v694
    %696 = vdwg.mxu0
    %v698 = vsel %vm97, %v695, 0
    %700 = vmatpush.msra.mxu0 0.0
    %701 = vmatpush.msra.mxu0 0.0
    %702 = vmatpush.msra.mxu0 0.0
    %703 = vmatpush.msra.mxu0 0.0
    %704 = vmatpush.msra.mxu0 0.0
    %705 = vmatpush.msra.mxu0 0.0
    %706 = vmatpush.msra.mxu0 0.0
    %707 = vmatpush.msra.mxu0 0.0
    %708 = vmatpush.msra.mxu0 0.0
    %709 = vmatpush.msra.mxu0 0.0
    %710 = vmatpush.msra.mxu0 0.0
    %711 = vmatpush.msra.mxu0 0.0
    %712 = vmatpush.msra.mxu0 0.0
    %713 = vmatpush.msra.mxu0 0.0
    %714 = vmatpush.msra.mxu0 0.0
    %715 = vmatpush.msra.mxu0 %v91
    %716 = vmatmul.f32.gmra.mxu0 %v698
    %v717 = vpop.f32.mrf.mxu0
    %v718 = vadd.f32 0.0, %v717
    %719 = vdwg.mxu0
    %v720 = vadd.f32 %v630, %v718
    %721 = vrot.lane.b32.xlu0 %v75, 104
    %v722 = vpop.permute.xlu0 %721
    %723 = vrot.lane.b32.xlu0 %v81, 72
    %v724 = vpop.permute.xlu0 %723
    %v725 = vsel %vm97, %v722, 0
    %v727 = vsel %vm97, %v724, 0
    %729 = vmatpush.xpose.msra.mxu0 0.0
    %730 = vmatpush.xpose.msra.mxu0 0.0
    %731 = vmatpush.xpose.msra.mxu0 0.0
    %732 = vmatpush.xpose.msra.mxu0 0.0
    %733 = vmatpush.xpose.msra.mxu0 0.0
    %734 = vmatpush.xpose.msra.mxu0 0.0
    %735 = vmatpush.xpose.msra.mxu0 0.0
    %736 = vmatpush.xpose.msra.mxu0 0.0
    %737 = vmatpush.xpose.msra.mxu0 0.0
    %738 = vmatpush.xpose.msra.mxu0 0.0
    %739 = vmatpush.xpose.msra.mxu0 0.0
    %740 = vmatpush.xpose.msra.mxu0 0.0
    %741 = vmatpush.xpose.msra.mxu0 0.0
    %742 = vmatpush.xpose.msra.mxu0 0.0
    %743 = vmatpush.xpose.msra.mxu0 0.0
    %744 = vmatpush.xpose.msra.mxu0 %v727
    %745 = vmatmul.f32.gmra.mxu0 %v725
    %v746 = vpop.f32.mrf.mxu0
    %v747 = vadd.f32 0.0, %v746
    %748 = vdwg.mxu0
    %v749 = vsel %vm97, %v747, -inf
    %750 = vmax.xlane.f32.xlu0 %v749
    %v751 = vpop.xlane.xlu0 %750
    %v752 = vsub.f32 %v747, %v751
    %v753 = vmul.f32 %v752, 1.442695
    %v754 = vpow.pop %v753
    %v755 = vsel %vm97, %v754, 0.0
    %756 = vadd.xlane.f32.xlu0 %v755
    %v757 = vpop.xlane.xlu0 %756
    %v758 = vrcp.pop %v757
    %v759 = vmul.f32 %v754, %v758
    %760 = vrot.lane.b32.xlu0 %v87, 40
    %v761 = vpop.permute.xlu0 %760
    %v764 = vsel %vm97, %v759, 0
    %766 = vmatpush.msra.mxu0 0.0
    %767 = vmatpush.msra.mxu0 0.0
    %768 = vmatpush.msra.mxu0 0.0
    %769 = vmatpush.msra.mxu0 0.0
    %770 = vmatpush.msra.mxu0 0.0
    %771 = vmatpush.msra.mxu0 0.0
    %772 = vmatpush.msra.mxu0 0.0
    %773 = vmatpush.msra.mxu0 0.0
    %774 = vmatpush.msra.mxu0 0.0
    %775 = vmatpush.msra.mxu0 0.0
    %776 = vmatpush.msra.mxu0 0.0
    %777 = vmatpush.msra.mxu0 0.0
    %778 = vmatpush.msra.mxu0 0.0
    %779 = vmatpush.msra.mxu0 0.0
    %780 = vmatpush.msra.mxu0 0.0
    %781 = vmatpush.msra.mxu0 %v761
    %782 = vmatmul.f32.gmra.mxu0 %v764
    %v783 = vpop.f32.mrf.mxu0
    %v784 = vadd.f32 0.0, %v783
    %785 = vdwg.mxu0
    %v787 = vsel %vm97, %v784, 0
    %789 = vmatpush.msra.mxu0 0.0
    %790 = vmatpush.msra.mxu0 0.0
    %791 = vmatpush.msra.mxu0 0.0
    %792 = vmatpush.msra.mxu0 0.0
    %793 = vmatpush.msra.mxu0 0.0
    %794 = vmatpush.msra.mxu0 0.0
    %795 = vmatpush.msra.mxu0 0.0
    %796 = vmatpush.msra.mxu0 0.0
    %797 = vmatpush.msra.mxu0 0.0
    %798 = vmatpush.msra.mxu0 0.0
    %799 = vmatpush.msra.mxu0 0.0
    %800 = vmatpush.msra.mxu0 0.0
    %801 = vmatpush.msra.mxu0 0.0
    %802 = vmatpush.msra.mxu0 0.0
    %803 = vmatpush.msra.mxu0 0.0
    %804 = vmatpush.msra.mxu0 %v92
    %805 = vmatmul.f32.gmra.mxu0 %v787
    %v806 = vpop.f32.mrf.mxu0
    %v807 = vadd.f32 0.0, %v806
    %808 = vdwg.mxu0
    %v809 = vadd.f32 %v720, %v807
    %v810 = vadd.f32 %v809, %v451
    %811 = vst [vmem:[#allocation2 + $0x8] sm:$0xff] %v810
    // Predicated region
    $region22: #{tpu_custom_call.1} parent=1 // pred_check
      _
    $region23: #{tpu_custom_call.1} parent=1 // pred_check_branch
      %813 = sbr.rel (0) target = $region25
    $region24: #{tpu_custom_call.1} parent=1 // pred_region
      %815 = vsyncadd [#allocation3], 0
      %s816 = sshll.u32 [#allocation2], 4
      %s817 = int_to_ptr.vmem [resolvable:$true] %s816
      %s818 = sshll.u32 %s5, 4
      %s819 = int_to_ptr.hbm [resolvable:$true] %s818
      %824 = dma.vmem_to_hbm [thread:$0]  %s817, 256, %s819, [#allocation3], 128, 128, 8
    $region25: #{tpu_custom_call.1} parent=1 // pred_fallthru
      _
    // Predicated region
    $region26: #{tpu_custom_call.1} parent=1 // pred_check
      _
    $region27: #{tpu_custom_call.1} parent=1 // pred_check_branch
      %826 = sbr.rel (0) target = $region29
    $region28: #{tpu_custom_call.1} parent=1 // pred_region
      %828 = dma.done [#allocation3], 256
    $region29: #{tpu_custom_call.1} parent=1 // pred_fallthru
      _
    %829 = vsyncpa [#allocation3], 1

</llo_original>
